<compile_context>
chip_gen: v6e
topology: v6e:2x2x1
jax: 0.10.0
libtpu: 0.0.40
codegen_flags: <defaults>
</compile_context>

<pallas_src>
import jax
import jax.numpy as jnp
from jax.experimental import pallas as pl
from jax.experimental.pallas import tpu as pltpu


def make_kernel(Cin, Cout, H, W):
    HW = H * W
    cidx = (H // 2) * W + (W // 2)   # flat index of the centre pixel

    def kernel(x_ref, w2_ref, w1_ref, b_ref, o_ref):
        # x_ref : (N, Cin, HW)    f32 VMEM   input, free reshape of NCHW
        # w2_ref: (Cin, Cout, 1)  f32 VMEM   padding=0 deconv weight
        # w1_ref: (Cin, Cout, 1)  f32 VMEM   padding=1 deconv weight
        # b_ref : (1, Cout, 1)    f32 VMEM   b1 + b2 folded (exact)
        # o_ref : (N, Cout, HW)   f32 VMEM   output, free reshape of NCHW
        x = x_ref[...]
        w2 = w2_ref[...]
        w1 = w1_ref[...]

        spatial = None                       # (N, Cout, HW)  pad=0 conv term
        cterm = b_ref[...]                   # (·, Cout, 1)   pad=1 centre term + biases
        for c in range(Cin):
            plane = x[:, c:c + 1, :]                    # (N, 1, HW) sublane slice
            center = x[:, c:c + 1, cidx:cidx + 1]       # (N, 1, 1)
            t = plane * w2[c:c + 1]                     # (N, Cout, HW) VPU broadcast-mul
            spatial = t if spatial is None else spatial + t
            cterm = cterm + center * w1[c:c + 1]        # (N, Cout, 1)

        out = spatial + cterm                           # broadcast add over pixels
        # torch.where(x4 > 0, x4, relu(x4)) == relu(x4)
        o_ref[...] = jnp.maximum(out, 0.0)              # ONE dense full-ref store

    return kernel


def _model_forward(x_nchw, w2, b2, w1, b1):
    """x_nchw: (N, 3, H, W) f32 -> (N, 8, H, W) f32.  Requires H == W == 3
    (the PyTorch module's x2 + x3 broadcast only works for 3x3 spatial)."""
    N, Cin, H, W = x_nchw.shape
    Cout = w2.shape[1]
    if (H - 2, W - 2) != (1, 1):
        raise ValueError("Model's pad=0 + pad=1 broadcast add requires H == W == 3")

    HW = H * W
    # All wrapper-side layout changes are pure reshapes (free in HBM, no transposes).
    x3d = x_nchw.reshape(N, Cin, HW)
    w2_3 = w2.reshape(Cin, Cout, 1)
    w1_3 = w1.reshape(Cin, Cout, 1)
    b_3 = (b1 + b2).reshape(1, Cout, 1)      # fold the two conv biases (exact)

    out3d = pl.pallas_call(
        make_kernel(Cin, Cout, H, W),
        out_shape=jax.ShapeDtypeStruct((N, Cout, HW), jnp.float32),
        in_specs=[
            pl.BlockSpec(memory_space=pltpu.MemorySpace.VMEM),   # x
            pl.BlockSpec(memory_space=pltpu.MemorySpace.VMEM),   # w2 (pad=0)
            pl.BlockSpec(memory_space=pltpu.MemorySpace.VMEM),   # w1 (pad=1)
            pl.BlockSpec(memory_space=pltpu.MemorySpace.VMEM),   # folded bias
        ],
        out_specs=pl.BlockSpec(memory_space=pltpu.MemorySpace.VMEM),
    )(x3d, w2_3, w1_3, b_3)
    return out3d.reshape(N, Cout, H, W)      # free reshape back to NCHW


model_forward = jax.jit(_model_forward)


def reference(x, w2, b2, w1, b1):
    # Pure-JAX reference of the PyTorch forward (NCHW, distinct weights).
    x2 = jnp.einsum("nchw,co->nohw", x, w2) + b2[None, :, None, None]          # pad=0
    x3 = (jnp.einsum("nchw,co->nohw", x, w1)
          + b1[None, :, None, None])[:, :, 1:-1, 1:-1]                          # pad=1 (centre crop)
    x4 = x2 + x3
    return jnp.where(x4 > 0, x4, jnp.maximum(x4, 0.0))


if __name__ == "__main__":
    key = jax.random.PRNGKey(0)
    kx, kw2, kb2, kw1, kb1 = jax.random.split(key, 5)

    N, Cin, Cout, S = 2, 3, 8, 3   # spatial must be 3 for the module's broadcast add
    x = jax.random.normal(kx, (N, Cin, S, S), dtype=jnp.float32)

    # ConvTranspose2d weights (Cin, Cout, 1, 1) collapsed to (Cin, Cout); distinct per layer.
    w2 = jax.random.normal(kw2, (Cin, Cout), dtype=jnp.float32) * 0.5   # padding=0 layer
    b2 = jax.random.normal(kb2, (Cout,), dtype=jnp.float32) * 0.1
    w1 = jax.random.normal(kw1, (Cin, Cout), dtype=jnp.float32) * 0.5   # padding=1 layer
    b1 = jax.random.normal(kb1, (Cout,), dtype=jnp.float32) * 0.1

    out = jax.block_until_ready(model_forward(x, w2, b2, w1, b1))
    ref = jax.block_until_ready(reference(x, w2, b2, w1, b1))

    assert out.shape == (N, Cout, S, S), out.shape
    assert jnp.allclose(out, ref, atol=1e-5, rtol=1e-5), "mismatch vs reference"
    print("KERNEL_OK")
</pallas_src>

<mosaic_0001>
module attributes {stable_mosaic.version = 11 : i64} {
  func.func @kernel(%arg0: memref<2x3x9xf32, #tpu.memory_space<vmem>>, %arg1: memref<3x8x1xf32, #tpu.memory_space<vmem>>, %arg2: memref<3x8x1xf32, #tpu.memory_space<vmem>>, %arg3: memref<1x8x1xf32, #tpu.memory_space<vmem>>, %arg4: memref<2x8x9xf32, #tpu.memory_space<vmem>>) attributes {dimension_semantics = [], scalar_prefetch = 0 : i64, scratch_operands = 0 : i64, tpu.core_type = #tpu.core_type<tc>} {
    %c0 = arith.constant 0 : index
    %c0_0 = arith.constant 0 : index
    %c0_1 = arith.constant 0 : index
    %0 = vector.load %arg0[%c0, %c0_0, %c0_1] : memref<2x3x9xf32, #tpu.memory_space<vmem>>, vector<2x3x9xf32>
    %c0_2 = arith.constant 0 : index
    %c0_3 = arith.constant 0 : index
    %c0_4 = arith.constant 0 : index
    %1 = vector.load %arg1[%c0_2, %c0_3, %c0_4] : memref<3x8x1xf32, #tpu.memory_space<vmem>>, vector<3x8x1xf32>
    %c0_5 = arith.constant 0 : index
    %c0_6 = arith.constant 0 : index
    %c0_7 = arith.constant 0 : index
    %2 = vector.load %arg2[%c0_5, %c0_6, %c0_7] : memref<3x8x1xf32, #tpu.memory_space<vmem>>, vector<3x8x1xf32>
    %c0_8 = arith.constant 0 : index
    %c0_9 = arith.constant 0 : index
    %c0_10 = arith.constant 0 : index
    %3 = vector.load %arg3[%c0_8, %c0_9, %c0_10] : memref<1x8x1xf32, #tpu.memory_space<vmem>>, vector<1x8x1xf32>
    %4 = vector.extract_strided_slice %0 {offsets = [0, 0, 0], sizes = [2, 1, 9], strides = [1, 1, 1]} : vector<2x3x9xf32> to vector<2x1x9xf32>
    %5 = vector.extract_strided_slice %0 {offsets = [0, 0, 4], sizes = [2, 1, 1], strides = [1, 1, 1]} : vector<2x3x9xf32> to vector<2x1x1xf32>
    %6 = vector.extract_strided_slice %1 {offsets = [0, 0, 0], sizes = [1, 8, 1], strides = [1, 1, 1]} : vector<3x8x1xf32> to vector<1x8x1xf32>
    %7 = vector.broadcast %4 : vector<2x1x9xf32> to vector<2x8x9xf32>
    %8 = vector.broadcast %6 : vector<1x8x1xf32> to vector<2x8x9xf32>
    %9 = arith.mulf %7, %8 : vector<2x8x9xf32>
    %10 = vector.extract_strided_slice %2 {offsets = [0, 0, 0], sizes = [1, 8, 1], strides = [1, 1, 1]} : vector<3x8x1xf32> to vector<1x8x1xf32>
    %11 = vector.broadcast %5 : vector<2x1x1xf32> to vector<2x8x1xf32>
    %12 = vector.broadcast %10 : vector<1x8x1xf32> to vector<2x8x1xf32>
    %13 = arith.mulf %11, %12 : vector<2x8x1xf32>
    %14 = vector.broadcast %3 : vector<1x8x1xf32> to vector<2x8x1xf32>
    %15 = arith.addf %14, %13 : vector<2x8x1xf32>
    %16 = vector.extract_strided_slice %0 {offsets = [0, 1, 0], sizes = [2, 1, 9], strides = [1, 1, 1]} : vector<2x3x9xf32> to vector<2x1x9xf32>
    %17 = vector.extract_strided_slice %0 {offsets = [0, 1, 4], sizes = [2, 1, 1], strides = [1, 1, 1]} : vector<2x3x9xf32> to vector<2x1x1xf32>
    %18 = vector.extract_strided_slice %1 {offsets = [1, 0, 0], sizes = [1, 8, 1], strides = [1, 1, 1]} : vector<3x8x1xf32> to vector<1x8x1xf32>
    %19 = vector.broadcast %16 : vector<2x1x9xf32> to vector<2x8x9xf32>
    %20 = vector.broadcast %18 : vector<1x8x1xf32> to vector<2x8x9xf32>
    %21 = arith.mulf %19, %20 : vector<2x8x9xf32>
    %22 = arith.addf %9, %21 : vector<2x8x9xf32>
    %23 = vector.extract_strided_slice %2 {offsets = [1, 0, 0], sizes = [1, 8, 1], strides = [1, 1, 1]} : vector<3x8x1xf32> to vector<1x8x1xf32>
    %24 = vector.broadcast %17 : vector<2x1x1xf32> to vector<2x8x1xf32>
    %25 = vector.broadcast %23 : vector<1x8x1xf32> to vector<2x8x1xf32>
    %26 = arith.mulf %24, %25 : vector<2x8x1xf32>
    %27 = arith.addf %15, %26 : vector<2x8x1xf32>
    %28 = vector.extract_strided_slice %0 {offsets = [0, 2, 0], sizes = [2, 1, 9], strides = [1, 1, 1]} : vector<2x3x9xf32> to vector<2x1x9xf32>
    %29 = vector.extract_strided_slice %0 {offsets = [0, 2, 4], sizes = [2, 1, 1], strides = [1, 1, 1]} : vector<2x3x9xf32> to vector<2x1x1xf32>
    %30 = vector.extract_strided_slice %1 {offsets = [2, 0, 0], sizes = [1, 8, 1], strides = [1, 1, 1]} : vector<3x8x1xf32> to vector<1x8x1xf32>
    %31 = vector.broadcast %28 : vector<2x1x9xf32> to vector<2x8x9xf32>
    %32 = vector.broadcast %30 : vector<1x8x1xf32> to vector<2x8x9xf32>
    %33 = arith.mulf %31, %32 : vector<2x8x9xf32>
    %34 = arith.addf %22, %33 : vector<2x8x9xf32>
    %35 = vector.extract_strided_slice %2 {offsets = [2, 0, 0], sizes = [1, 8, 1], strides = [1, 1, 1]} : vector<3x8x1xf32> to vector<1x8x1xf32>
    %36 = vector.broadcast %29 : vector<2x1x1xf32> to vector<2x8x1xf32>
    %37 = vector.broadcast %35 : vector<1x8x1xf32> to vector<2x8x1xf32>
    %38 = arith.mulf %36, %37 : vector<2x8x1xf32>
    %39 = arith.addf %27, %38 : vector<2x8x1xf32>
    %40 = vector.broadcast %39 : vector<2x8x1xf32> to vector<2x8x9xf32>
    %41 = arith.addf %34, %40 : vector<2x8x9xf32>
    %cst = arith.constant 0.000000e+00 : f32
    %42 = vector.broadcast %cst : f32 to vector<2x8x9xf32>
    %43 = arith.maximumf %41, %42 : vector<2x8x9xf32>
    %c0_11 = arith.constant 0 : index
    %c0_12 = arith.constant 0 : index
    %c0_13 = arith.constant 0 : index
    %44 = vector.load %arg4[%c0_11, %c0_12, %c0_13] : memref<2x8x9xf32, #tpu.memory_space<vmem>>, vector<2x8x9xf32>
    tpu.vector_store %arg4[%c0_11, %c0_12, %c0_13], %43 {strides = array<i32>} : memref<2x8x9xf32, #tpu.memory_space<vmem>>, vector<2x8x9xf32>,
    return
  }
}

</mosaic_0001>

<llo_original>
// kernel: _model_forward.1
$region0: #{_model_forward.1}
  #allocation0 [shape = 'u32[]', space=smem, size = 0x4, offset = 0x4, fixed_abs, tag = 'smem constant byte address 0x4 - core index']
  #allocation1 [shape = 'u32[144,128]{1,0:T(1,128)}', space=vmem, size = 0x12000, scoped, tag = 'internal scratch']
  %s0 = inlined_call_operand.vmem [shape: f32[2,3,9], index: 0, kind: input, shape index: {}]
  %s1 = inlined_call_operand.vmem [shape: f32[3,8,1], index: 1, kind: input, shape index: {}]
  %s2 = inlined_call_operand.vmem [shape: f32[3,8,1], index: 2, kind: input, shape index: {}]
  %s3 = inlined_call_operand.vmem [shape: f32[1,8,1], index: 3, kind: input, shape index: {}]
  %s4 = inlined_call_operand.vmem [shape: f32[2,8,9], index: 4, kind: output, shape index: {}]
  %s5 = sld [smem:[#allocation0]]
  $region26: #{_model_forward.1} parent=0
    _
  %s7 = ssub.s32 1, %s5
  %s8 = scalar_select 0, %s7, %s5
  // Predicated region
  $region2: #{_model_forward.1} parent=0 // pred_check
    _
  $region3: #{_model_forward.1} parent=0 // pred_check_branch
    %10 = sbr.rel (0) target = $region5
  $region4: #{_model_forward.1} parent=0 // pred_region
    _
  $region5: #{_model_forward.1} parent=0 // pred_fallthru
    _
  // Predicated region
  $region6: #{_model_forward.1} parent=0 // pred_check
    _
  $region7: #{_model_forward.1} parent=0 // pred_check_branch
    %12 = sbr.rel (0) target = $region9
  $region8: #{_model_forward.1} parent=0 // pred_region
    _
  $region9: #{_model_forward.1} parent=0 // pred_fallthru
    _
  // Predicated region
  $region10: #{_model_forward.1} parent=0 // pred_check
    _
  $region11: #{_model_forward.1} parent=0 // pred_check_branch
    %14 = sbr.rel (0) target = $region13
  $region12: #{_model_forward.1} parent=0 // pred_region
    _
  $region13: #{_model_forward.1} parent=0 // pred_fallthru
    _
  // Predicated region
  $region14: #{_model_forward.1} parent=0 // pred_check
    _
  $region15: #{_model_forward.1} parent=0 // pred_check_branch
    %16 = sbr.rel (0) target = $region17
  $region16: #{_model_forward.1} parent=0 // pred_region
    _
  $region17: #{_model_forward.1} parent=0 // pred_fallthru
    _
  %v17 = vld [vmem:[%s0] sm:$0x7]
  %v18 = vld [vmem:[%s0 + $0x4] sm:$0x7]
  %v19 = vld [vmem:[%s1] sm:$0xff]
  %v20 = vld [vmem:[%s1 + $0x8] sm:$0xff]
  %v21 = vld [vmem:[%s1 + $0x10] sm:$0xff]
  %v22 = vld [vmem:[%s2] sm:$0xff]
  %v23 = vld [vmem:[%s2 + $0x8] sm:$0xff]
  %v24 = vld [vmem:[%s2 + $0x10] sm:$0xff]
  %v25 = vld [vmem:[%s3] sm:$0xff]
  %v26 = vlaneseq
  %v27 = vshrl.u32 %v26, 7
  %v28 = vsub.s32 0, %v27
  %v29 = vrot.slane %v17, %v28
  %v30 = vlaneseq
  %v31 = vshrl.u32 %v30, 7
  %v32 = vsub.s32 0, %v31
  %v33 = vrot.slane %v18, %v32
  %35 = vset.pattern.permute.xlu0 0
  %36 = vperm.xlu0 %35, %v19
  %v37 = vpop.permute.xlu0 %36
  %v39 = vmul.f32 %v29, %v37
  %v40 = vmul.f32 %v33, %v37
  %42 = vrot.lane.b32.xlu0 %v22, 4
  %v43 = vpop.permute.xlu0 %42
  %v45 = vmul.f32 %v29, %v43
  %v46 = vmul.f32 %v33, %v43
  %49 = vrot.lane.b32.xlu0 %v45, 124
  %v50 = vpop.permute.xlu0 %49
  %51 = vrot.lane.b32.xlu0 %v46, 124
  %v52 = vpop.permute.xlu0 %51
  %v55 = vadd.f32 %v25, %v50
  %v56 = vadd.f32 %v25, %v52
  %v57 = vlaneseq
  %v58 = vshrl.u32 %v57, 7
  %v59 = vsub.s32 1, %v58
  %v60 = vrot.slane %v17, %v59
  %v61 = vlaneseq
  %v62 = vshrl.u32 %v61, 7
  %v63 = vsub.s32 1, %v62
  %v64 = vrot.slane %v18, %v63
  %66 = vset.pattern.permute.xlu0 0
  %67 = vperm.xlu0 %66, %v20
  %v68 = vpop.permute.xlu0 %67
  %v70 = vmul.f32 %v60, %v68
  %v71 = vmul.f32 %v64, %v68
  %v72 = vadd.f32 %v39, %v70
  %v73 = vadd.f32 %v40, %v71
  %75 = vrot.lane.b32.xlu0 %v23, 4
  %v76 = vpop.permute.xlu0 %75
  %v78 = vmul.f32 %v60, %v76
  %v79 = vmul.f32 %v64, %v76
  %82 = vrot.lane.b32.xlu0 %v78, 124
  %v83 = vpop.permute.xlu0 %82
  %84 = vrot.lane.b32.xlu0 %v79, 124
  %v85 = vpop.permute.xlu0 %84
  %v88 = vadd.f32 %v55, %v83
  %v89 = vadd.f32 %v56, %v85
  %v90 = vlaneseq
  %v91 = vshrl.u32 %v90, 7
  %v92 = vsub.s32 2, %v91
  %v93 = vrot.slane %v17, %v92
  %v94 = vlaneseq
  %v95 = vshrl.u32 %v94, 7
  %v96 = vsub.s32 2, %v95
  %v97 = vrot.slane %v18, %v96
  %99 = vset.pattern.permute.xlu0 0
  %100 = vperm.xlu0 %99, %v21
  %v101 = vpop.permute.xlu0 %100
  %v103 = vmul.f32 %v93, %v101
  %v104 = vmul.f32 %v97, %v101
  %v105 = vadd.f32 %v72, %v103
  %v106 = vadd.f32 %v73, %v104
  %108 = vrot.lane.b32.xlu0 %v24, 4
  %v109 = vpop.permute.xlu0 %108
  %v111 = vmul.f32 %v93, %v109
  %v112 = vmul.f32 %v97, %v109
  %115 = vrot.lane.b32.xlu0 %v111, 124
  %v116 = vpop.permute.xlu0 %115
  %117 = vrot.lane.b32.xlu0 %v112, 124
  %v118 = vpop.permute.xlu0 %117
  %v121 = vadd.f32 %v88, %v116
  %v122 = vadd.f32 %v89, %v118
  %124 = vset.pattern.permute.xlu0 0
  %125 = vperm.xlu0 %124, %v121
  %v126 = vpop.permute.xlu0 %125
  %129 = vset.pattern.permute.xlu0 0
  %130 = vperm.xlu0 %129, %v122
  %v131 = vpop.permute.xlu0 %130
  %v133 = vadd.f32 %v105, %v126
  %v134 = vadd.f32 %v106, %v131
  %v135 = vmax.f32 %v133, 0.0
  %v136 = vmax.f32 %v134, 0.0
  %vm137 = vcmask 72704
  %138 = vst.msk [vmem:[%s4] sm:$0xff] %vm137, %v135
  %139 = vst.msk [vmem:[%s4 + $0x8] sm:$0xff] %vm137, %v136
  // Predicated region
  $region18: #{_model_forward.1} parent=0 // pred_check
    _
  $region19: #{_model_forward.1} parent=0 // pred_check_branch
    %141 = sbr.rel (0) target = $region21
  $region20: #{_model_forward.1} parent=0 // pred_region
    _
  $region21: #{_model_forward.1} parent=0 // pred_fallthru
    _
  // Predicated region
  $region22: #{_model_forward.1} parent=0 // pred_check
    _
  $region23: #{_model_forward.1} parent=0 // pred_check_branch
    %143 = sbr.rel (0) target = $region25
  $region24: #{_model_forward.1} parent=0 // pred_region
    _
  $region25: #{_model_forward.1} parent=0 // pred_fallthru
    _

</llo_original>
